<compile_context>
chip_gen: v7x
topology: tpu7x:2x2x1
jax: 0.10.0
libtpu: 0.0.40
codegen_flags: <defaults>
</compile_context>

<pallas_src>
import math

import jax
import jax.numpy as jnp
from jax.experimental import pallas as pl
from jax.experimental.pallas import tpu as pltpu


def _make_fused_tcn_kernel(levels, kernel_size):
    """Kernel for one (batch, L-tile) grid step, all levels fused.

    x_ref  : (C, TL)            input activations for this tile
    col_ref: (1, TL) int32      column index within each H row (for causal mask)
    w_ref  : (levels, K, C, C)  per-level per-tap weights (VMEM-resident)
    b_ref  : (levels, C, 1)     per-level bias (VMEM-resident)
    o_ref  : (C, TL)            output
    """
    K = kernel_size

    def kernel(x_ref, col_ref, w_ref, b_ref, o_ref):
        col = col_ref[...]                                   # (1, TL)
        act = x_ref[...].astype(jnp.float32)                 # (C, TL), f32 accum
        for lvl in range(levels):                            # static unroll
            d = 2 ** lvl
            acc = None
            for k in range(K):                               # static unroll
                shift = (K - 1 - k) * d                      # causal tap offset
                xt = act
                if shift > 0:
                    # xt[:, l] = act[:, l - shift]; tiles are H-row aligned so
                    # the wrap-around region is exactly the causal-pad region,
                    # which the per-row mask zeroes (== pad + Chomp1d).
                    xt = pltpu.roll(act, shift, axis=1)
                    xt = jnp.where(col < shift, 0.0, xt)
                t = jnp.dot(w_ref[lvl, k].astype(jnp.float32), xt,
                            preferred_element_type=jnp.float32)
                acc = t if acc is None else acc + t
            act = jnp.maximum(acc + b_ref[lvl].astype(jnp.float32), 0.0)  # bias+ReLU
        o_ref[...] = act.astype(o_ref.dtype)

    return kernel


def _vmem_capacity_bytes():
    """Generation-aware VMEM capacity (v5e/v6e 128 MiB, v7x 64 MiB/TC)."""
    try:
        return int(pltpu.get_tpu_info().vmem_capacity_bytes)
    except Exception:
        return 64 * 1024 * 1024            # conservative fallback (v7x-safe)


def _choose_l_tile(L, W, bytes_per_col, batch, budget_bytes, hard_cap=8192):
    """Pick a lane tile TL that (a) is a multiple of W (H-row aligned, required
    for the in-VMEM causal shift/mask), (b) prefers multiples of 128
    (lane-dense stores), (c) divides L exactly (no masked tail tile), (d) fits
    the VMEM budget, (e) leaves >=2 grid blocks when batch == 1 (v7x: 2 TCs)."""
    lane_unit = W * 128 // math.gcd(W, 128)              # lcm(W, 128)
    unit = lane_unit if (lane_unit <= L and L % lane_unit == 0) else W
    n_units = L // unit                                   # exact: unit | L
    budget_units = max(1, int(budget_bytes) // max(bytes_per_col, 1) // unit)
    cap_units = max(1, hard_cap // unit)
    max_units = max(1, min(n_units, budget_units, cap_units))
    if batch == 1 and n_units >= 2:                       # keep both v7x TCs busy
        max_units = min(max_units, max(1, n_units // 2))
    for u in range(max_units, 0, -1):                     # largest divisor tile
        if n_units % u == 0:
            return u * unit
    return unit


def temporal_conv_net(x, params, *, kernel_size=2, compute_dtype=None):
    """Forward pass of TemporalConvNet: `levels` fused causal-conv blocks.

    x: (B, features, H, W); params: list of (weight (C,C,1,K), bias (C,)).
    compute_dtype: optional I/O dtype for the kernel boundary (e.g. jnp.bfloat16
    on v6e/v7x to halve HBM bytes); accumulation is always f32.
    """
    B, C, H, W = x.shape
    levels = len(params)
    K = kernel_size
    L = H * W
    cdt = jnp.dtype(compute_dtype) if compute_dtype is not None else jnp.dtype(x.dtype)

    # ---- wrapper-side layout plumbing (no duplication, no causal pad) ----
    xf = x.reshape(B, C, L).astype(cdt)                                  # (B, C, L)
    # (levels, K, C_out, C_in): wf[i, k] = weight_i[:, :, 0, k]
    wf = jnp.stack([jnp.transpose(w[:, :, 0, :], (2, 0, 1)) for w, _ in params]).astype(cdt)
    bf = jnp.stack([b for _, b in params]).reshape(levels, C, 1).astype(jnp.float32)
    col = (jnp.arange(L, dtype=jnp.int32) % W).reshape(1, L)             # col within H row

    # ---- generation-aware VMEM budget / tiling ----
    vmem_cap = _vmem_capacity_bytes()
    vmem_limit = int(min((vmem_cap * 3) // 4, 100 * 1024 * 1024))        # 96 MiB v5e/v6e, 48 MiB v7x
    in_it = cdt.itemsize
    out_it = jnp.dtype(x.dtype).itemsize
    # double-buffered in/out blocks + col + a few live f32 (C, TL) temporaries
    bytes_per_col = 2 * C * (in_it + out_it) + 2 * 4 + 16 * C
    TL = _choose_l_tile(L, W, bytes_per_col, B, budget_bytes=vmem_limit // 4)
    assert TL % W == 0 and L % TL == 0
    grid = (B, pl.cdiv(L, TL))

    cost = pl.CostEstimate(
        flops=levels * (2 * K * C * C + 2 * C) * B * L,
        transcendentals=0,
        bytes_accessed=B * C * L * (in_it + out_it) + B * L * 4
        + levels * K * C * C * in_it + levels * C * 4,
    )

    out = pl.pallas_call(
        _make_fused_tcn_kernel(levels, K),
        out_shape=jax.ShapeDtypeStruct((B, C, L), x.dtype),
        grid_spec=pltpu.PrefetchScalarGridSpec(
            num_scalar_prefetch=0,
            grid=grid,
            in_specs=[
                pl.BlockSpec((pl.Squeezed(), C, TL), lambda b, l: (b, 0, l)),
                pl.BlockSpec((1, TL), lambda b, l: (0, l)),
                pl.BlockSpec((levels, K, C, C), lambda b, l: (0, 0, 0, 0)),   # VMEM-resident
                pl.BlockSpec((levels, C, 1), lambda b, l: (0, 0, 0)),         # VMEM-resident
            ],
            out_specs=pl.BlockSpec((pl.Squeezed(), C, TL), lambda b, l: (b, 0, l)),
        ),
        compiler_params=pltpu.CompilerParams(
            dimension_semantics=("parallel", "parallel"),
            vmem_limit_bytes=vmem_limit,
        ),
        cost_estimate=cost,
    )(xf, col, wf, bf)

    return out.reshape(B, C, H, W)


def temporal_conv_net_ref(x, params, *, kernel_size=2):
    """Pure-JAX reference following the PyTorch op structure:
    symmetric pad -> dilated conv -> Chomp1d -> ReLU (dropout = identity)."""
    y = x
    for i, (w, b) in enumerate(params):
        d = 2 ** i
        pad = (kernel_size - 1) * d
        B, C, H, W = y.shape
        xp = jnp.pad(y.astype(jnp.float32), ((0, 0), (0, 0), (0, 0), (pad, pad)))
        out_w = W + pad                                   # conv width before chomp
        acc = jnp.zeros((B, w.shape[0], H, out_w), jnp.float32) \
            + b.reshape(1, -1, 1, 1).astype(jnp.float32)
        for k in range(kernel_size):
            xs = jax.lax.slice_in_dim(xp, k * d, k * d + out_w, axis=3)
            acc = acc + jnp.einsum(
                "oc,bchw->bohw", w[:, :, 0, k].astype(jnp.float32), xs,
                precision=jax.lax.Precision.HIGHEST)
        acc = acc[:, :, :, :W]                            # Chomp1d
        y = jnp.maximum(acc, 0.0).astype(x.dtype)
    return y


if __name__ == "__main__":
    key = jax.random.PRNGKey(0)
    B, C, H, W = 2, 4, 16, 16          # features = C = 4
    K, LEVELS = 2, 2                   # kernel_size=2; 2 levels exercises the fused path

    kx, kp = jax.random.split(key)
    x = jax.random.normal(kx, (B, C, H, W), dtype=jnp.float32)

    # Conv2d default init: U(-1/sqrt(fan_in), 1/sqrt(fan_in)), fan_in = C*1*K.
    params = []
    for i in range(LEVELS):
        kw_i, kb_i, kp = jax.random.split(kp, 3)
        bound = 1.0 / float(C * 1 * K) ** 0.5
        w = jax.random.uniform(kw_i, (C, C, 1, K), minval=-bound, maxval=bound,
                               dtype=jnp.float32)
        b = jax.random.uniform(kb_i, (C,), minval=-bound, maxval=bound,
                               dtype=jnp.float32)
        params.append((w, b))

    out = temporal_conv_net(x, params, kernel_size=K)
    out = jax.block_until_ready(out)

    ref = temporal_conv_net_ref(x, params, kernel_size=K)
    assert out.shape == x.shape and out.dtype == x.dtype
    assert jnp.allclose(out, ref, atol=1e-4, rtol=1e-4), \
        f"mismatch vs reference (max abs err {jnp.max(jnp.abs(out - ref))})"

    print("KERNEL_OK")
</pallas_src>

<mosaic_0001>
module attributes {stable_mosaic.version = 11 : i64} {
  func.func @kernel(%arg0: i32, %arg1: i32, %arg2: memref<1x4x256xf32, #tpu.memory_space<vmem>>, %arg3: memref<1x256xi32, #tpu.memory_space<vmem>>, %arg4: memref<2x2x4x4xf32, #tpu.memory_space<vmem>>, %arg5: memref<2x4x1xf32, #tpu.memory_space<vmem>>, %arg6: memref<1x4x256xf32, #tpu.memory_space<vmem>>) attributes {dimension_semantics = [#tpu.dimension_semantics<parallel>, #tpu.dimension_semantics<parallel>], iteration_bounds = array<i64: 2, 1>, scalar_prefetch = 0 : i64, scratch_operands = 0 : i64, tpu.core_type = #tpu.core_type<tc>, window_params = [{transform_indices = @transform_0, window_bounds = array<i64: 1, 4, 256>}, {transform_indices = @transform_1, window_bounds = array<i64: 1, 256>}, {pipeline_mode = #tpu.pipeline_mode<synchronous>, transform_indices = @transform_2, window_bounds = array<i64: 2, 2, 4, 4>}, {pipeline_mode = #tpu.pipeline_mode<synchronous>, transform_indices = @transform_3, window_bounds = array<i64: 2, 4, 1>}, {transform_indices = @transform_4, window_bounds = array<i64: 1, 4, 256>}]} {
    %c0 = arith.constant 0 : index
    %c0_0 = arith.constant 0 : index
    %0 = vector.load %arg3[%c0, %c0_0] : memref<1x256xi32, #tpu.memory_space<vmem>>, vector<1x256xi32>
    %c0_1 = arith.constant 0 : index
    %c0_2 = arith.constant 0 : index
    %c0_3 = arith.constant 0 : index
    %1 = vector.load %arg2[%c0_1, %c0_2, %c0_3] : memref<1x4x256xf32, #tpu.memory_space<vmem>>, vector<1x4x256xf32>
    %2 = vector.shape_cast %1 : vector<1x4x256xf32> to vector<4x256xf32>
    %c1_i32 = arith.constant 1 : i32
    %3 = tpu.dynamic_rotate %2 by %c1_i32 dim 1 : vector<4x256xf32>, i32 -> vector<4x256xf32>
    %c1_i32_4 = arith.constant 1 : i32
    %4 = vector.broadcast %c1_i32_4 : i32 to vector<1x256xi32>
    %5 = arith.cmpi slt, %0, %4 : vector<1x256xi32>
    %cst = arith.constant 0.000000e+00 : f32
    %6 = vector.shape_cast %5 : vector<1x256xi1> to vector<1x256xi1>
    %7 = vector.broadcast %6 : vector<1x256xi1> to vector<4x256xi1>
    %8 = vector.broadcast %cst : f32 to vector<4x256xf32>
    %9 = arith.select %7, %8, %3 : vector<4x256xi1>, vector<4x256xf32>
    %c0_5 = arith.constant 0 : index
    %c0_6 = arith.constant 0 : index
    %c0_7 = arith.constant 0 : index
    %c0_8 = arith.constant 0 : index
    %10 = vector.load %arg4[%c0_5, %c0_6, %c0_7, %c0_8] : memref<2x2x4x4xf32, #tpu.memory_space<vmem>>, vector<1x1x4x4xf32>
    %11 = vector.shape_cast %10 : vector<1x1x4x4xf32> to vector<4x4xf32>
    %cst_9 = arith.constant dense<0.000000e+00> : vector<4x256xf32>
    %12 = tpu.matmul %11, %9, %cst_9 {dimension_numbers = #tpu.dot_dimension_numbers<[1], [0], [0], [1], [0, 0, 1, 1], [], []>} : vector<4x4xf32>, vector<4x256xf32>, vector<4x256xf32> -> vector<4x256xf32>
    %c0_10 = arith.constant 0 : index
    %c1 = arith.constant 1 : index
    %c0_11 = arith.constant 0 : index
    %c0_12 = arith.constant 0 : index
    %13 = vector.load %arg4[%c0_10, %c1, %c0_11, %c0_12] : memref<2x2x4x4xf32, #tpu.memory_space<vmem>>, vector<1x1x4x4xf32>
    %14 = vector.shape_cast %13 : vector<1x1x4x4xf32> to vector<4x4xf32>
    %cst_13 = arith.constant dense<0.000000e+00> : vector<4x256xf32>
    %15 = tpu.matmul %14, %2, %cst_13 {dimension_numbers = #tpu.dot_dimension_numbers<[1], [0], [0], [1], [0, 0, 1, 1], [], []>} : vector<4x4xf32>, vector<4x256xf32>, vector<4x256xf32> -> vector<4x256xf32>
    %16 = arith.addf %12, %15 : vector<4x256xf32>
    %c0_14 = arith.constant 0 : index
    %c0_15 = arith.constant 0 : index
    %c0_16 = arith.constant 0 : index
    %17 = vector.load %arg5[%c0_14, %c0_15, %c0_16] : memref<2x4x1xf32, #tpu.memory_space<vmem>>, vector<1x4x1xf32>
    %18 = vector.shape_cast %17 : vector<1x4x1xf32> to vector<4x1xf32>
    %19 = vector.broadcast %18 : vector<4x1xf32> to vector<4x256xf32>
    %20 = arith.addf %16, %19 : vector<4x256xf32>
    %cst_17 = arith.constant 0.000000e+00 : f32
    %21 = vector.broadcast %cst_17 : f32 to vector<4x256xf32>
    %22 = arith.maximumf %20, %21 : vector<4x256xf32>
    %c2_i32 = arith.constant 2 : i32
    %23 = tpu.dynamic_rotate %22 by %c2_i32 dim 1 : vector<4x256xf32>, i32 -> vector<4x256xf32>
    %c2_i32_18 = arith.constant 2 : i32
    %24 = vector.broadcast %c2_i32_18 : i32 to vector<1x256xi32>
    %25 = arith.cmpi slt, %0, %24 : vector<1x256xi32>
    %cst_19 = arith.constant 0.000000e+00 : f32
    %26 = vector.shape_cast %25 : vector<1x256xi1> to vector<1x256xi1>
    %27 = vector.broadcast %26 : vector<1x256xi1> to vector<4x256xi1>
    %28 = vector.broadcast %cst_19 : f32 to vector<4x256xf32>
    %29 = arith.select %27, %28, %23 : vector<4x256xi1>, vector<4x256xf32>
    %c1_20 = arith.constant 1 : index
    %c0_21 = arith.constant 0 : index
    %c0_22 = arith.constant 0 : index
    %c0_23 = arith.constant 0 : index
    %30 = vector.load %arg4[%c1_20, %c0_21, %c0_22, %c0_23] : memref<2x2x4x4xf32, #tpu.memory_space<vmem>>, vector<1x1x4x4xf32>
    %31 = vector.shape_cast %30 : vector<1x1x4x4xf32> to vector<4x4xf32>
    %cst_24 = arith.constant dense<0.000000e+00> : vector<4x256xf32>
    %32 = tpu.matmul %31, %29, %cst_24 {dimension_numbers = #tpu.dot_dimension_numbers<[1], [0], [0], [1], [0, 0, 1, 1], [], []>} : vector<4x4xf32>, vector<4x256xf32>, vector<4x256xf32> -> vector<4x256xf32>
    %c1_25 = arith.constant 1 : index
    %c1_26 = arith.constant 1 : index
    %c0_27 = arith.constant 0 : index
    %c0_28 = arith.constant 0 : index
    %33 = vector.load %arg4[%c1_25, %c1_26, %c0_27, %c0_28] : memref<2x2x4x4xf32, #tpu.memory_space<vmem>>, vector<1x1x4x4xf32>
    %34 = vector.shape_cast %33 : vector<1x1x4x4xf32> to vector<4x4xf32>
    %cst_29 = arith.constant dense<0.000000e+00> : vector<4x256xf32>
    %35 = tpu.matmul %34, %22, %cst_29 {dimension_numbers = #tpu.dot_dimension_numbers<[1], [0], [0], [1], [0, 0, 1, 1], [], []>} : vector<4x4xf32>, vector<4x256xf32>, vector<4x256xf32> -> vector<4x256xf32>
    %36 = arith.addf %32, %35 : vector<4x256xf32>
    %c1_30 = arith.constant 1 : index
    %c0_31 = arith.constant 0 : index
    %c0_32 = arith.constant 0 : index
    %37 = vector.load %arg5[%c1_30, %c0_31, %c0_32] : memref<2x4x1xf32, #tpu.memory_space<vmem>>, vector<1x4x1xf32>
    %38 = vector.shape_cast %37 : vector<1x4x1xf32> to vector<4x1xf32>
    %39 = vector.broadcast %38 : vector<4x1xf32> to vector<4x256xf32>
    %40 = arith.addf %36, %39 : vector<4x256xf32>
    %cst_33 = arith.constant 0.000000e+00 : f32
    %41 = vector.broadcast %cst_33 : f32 to vector<4x256xf32>
    %42 = arith.maximumf %40, %41 : vector<4x256xf32>
    %c0_34 = arith.constant 0 : index
    %c0_35 = arith.constant 0 : index
    %c0_36 = arith.constant 0 : index
    %43 = vector.load %arg6[%c0_34, %c0_35, %c0_36] : memref<1x4x256xf32, #tpu.memory_space<vmem>>, vector<1x4x256xf32>
    %44 = vector.shape_cast %43 : vector<1x4x256xf32> to vector<4x256xf32>
    %45 = vector.shape_cast %42 : vector<4x256xf32> to vector<1x4x256xf32>
    tpu.vector_store %arg6[%c0_34, %c0_35, %c0_36], %45 {strides = array<i32>} : memref<1x4x256xf32, #tpu.memory_space<vmem>>, vector<1x4x256xf32>,
    return
  }
  func.func @transform_0(%arg0: i32, %arg1: i32) -> (i32, i32, i32) {
    %c0_i32 = arith.constant 0 : i32
    %c0_i32_0 = arith.constant 0 : i32
    return %arg0, %c0_i32, %arg1 : i32, i32, i32
  }
  func.func @transform_1(%arg0: i32, %arg1: i32) -> (i32, i32) {
    %c0_i32 = arith.constant 0 : i32
    %c0_i32_0 = arith.constant 0 : i32
    return %c0_i32, %arg1 : i32, i32
  }
  func.func @transform_2(%arg0: i32, %arg1: i32) -> (i32, i32, i32, i32) {
    %c0_i32 = arith.constant 0 : i32
    %c0_i32_0 = arith.constant 0 : i32
    %c0_i32_1 = arith.constant 0 : i32
    %c0_i32_2 = arith.constant 0 : i32
    %c0_i32_3 = arith.constant 0 : i32
    return %c0_i32, %c0_i32_0, %c0_i32_1, %c0_i32_2 : i32, i32, i32, i32
  }
  func.func @transform_3(%arg0: i32, %arg1: i32) -> (i32, i32, i32) {
    %c0_i32 = arith.constant 0 : i32
    %c0_i32_0 = arith.constant 0 : i32
    %c0_i32_1 = arith.constant 0 : i32
    %c0_i32_2 = arith.constant 0 : i32
    return %c0_i32, %c0_i32_0, %c0_i32_1 : i32, i32, i32
  }
  func.func @transform_4(%arg0: i32, %arg1: i32) -> (i32, i32, i32) {
    %c0_i32 = arith.constant 0 : i32
    %c0_i32_0 = arith.constant 0 : i32
    return %arg0, %c0_i32, %arg1 : i32, i32, i32
  }
}

</mosaic_0001>

<llo_original>
// kernel: tpu_custom_call.1
$region0: #{tpu_custom_call.1}
  #allocation0 [shape = 'u32[]', space=smem, size = 0x4, offset = 0x4, fixed_abs, tag = 'smem constant byte address 0x4 - core index']
  #allocation1 [shape = 'u32[144,128]{1,0:T(1,128)}', space=vmem, size = 0x12000, scoped, tag = 'internal scratch']
  %s0 = inlined_call_operand.hbm [shape: f32[2,4,256], index: 0, kind: input, shape index: {}]
  %s1 = inlined_call_operand.hbm [shape: s32[1,256], index: 1, kind: input, shape index: {}]
  %s2 = inlined_call_operand.vmem [shape: f32[2,2,4,4], index: 2, kind: input, shape index: {}]
  %s3 = inlined_call_operand.vmem [shape: f32[2,4,1], index: 3, kind: input, shape index: {}]
  %s4 = inlined_call_operand.hbm [shape: f32[2,4,256], index: 4, kind: output, shape index: {}]
  %s5 = sld [smem:[#allocation0]]
  $region57: #{tpu_custom_call.1} parent=0
    _
  %s7 = ssub.s32 1, %s5
  %s8 = scalar_select 0, %s7, %s5
  $region1: #{tpu_custom_call.1} parent=0
    #allocation2 [shape = 'u8[8192]{0}', space=vmem, size = 0x2000, scoped, tag = 'input window, operand 0']
    #allocation3 [shape = 's32[2]{0}', space=sflag, size = 0x8, scoped, tag = 'scoped memory for tpu_custom_call.1']
    #allocation4 [shape = 's32[2]{0}', space=sflag, size = 0x8, scoped, tag = 'scoped memory for tpu_custom_call.1']
    #allocation5 [shape = 'u8[1024]{0}', space=vmem, size = 0x400, scoped, tag = 'input window, operand 1, single buffered']
    #allocation6 [shape = 's32[1]{0}', space=sflag, size = 0x4, scoped, tag = 'scoped memory for tpu_custom_call.1']
    #allocation7 [shape = 'u8[8192]{0}', space=vmem, size = 0x2000, scoped, tag = 'output window, operand 0']
    %9 = vsyncpa [#allocation3], 0
    %s10 = scalar_lea.sflag [#allocation3], 1
    %11 = vsyncpa %s10, 0
    %12 = vsyncpa [#allocation6], 0
    %13 = vsyncpa [#allocation4], 0
    %s14 = scalar_lea.sflag [#allocation4], 1
    %15 = vsyncpa %s14, 0
    loop: start=0, step=1, limit=4
    $region2: #{tpu_custom_call.1} parent=1 // loop_pre_header
      _
    $region3: #{tpu_custom_call.1} parent=1 // loop_header
      %s17 = sphi 0, %s21
      %p18 = scmp.ge.s32.totalorder %s17, 4
      %s24 = sphi 0, %s36
      %s25 = sphi 0, %s32
      %s26 = sphi 0, %s24
      %s27 = sphi 0, %s25
      %s28 = sphi 0, %s26
      %s29 = sphi 0, %s27
      %s41 = sphi 0, %s43
      %s44 = sphi 0, %s41
      %s45 = sphi 0, %s44
      %s61 = sphi 0, %s45
      %s67 = sphi 0, %s69
      %s70 = sphi 0, %s67
      %s71 = sphi 0, %s70
      %s87 = sphi 0, %s71
      %s91 = sphi 0, %s91
      %s93 = sphi 0, %s91
      %s94 = sphi 0, %s93
      %s108 = sphi 0, %s94
      %s112 = sphi 0, %s112
      %s114 = sphi 0, %s112
      %s115 = sphi 0, %s114
      %s129 = sphi 0, %s115
      %s137 = sphi 0, %s139
      %s140 = sphi 0, %s137
      %s141 = sphi 0, %s140
      %s157 = sphi 0, %s141
    $region4: #{tpu_custom_call.1} parent=1 // loop_header_branch
      %20 = sbr.rel (%p18) target = $region8
    $region5: #{tpu_custom_call.1} parent=1 // loop_body
      %s22 = ssub.s32 %s17, 1
      %s23 = ssub.s32 %s17, 2
      %s30 = sadd.s32 1, %s25
      %p31 = scmp.ge.s32.totalorder %s30, 1
      %s32 = scalar_select %p31, 0, %s30
      %s33 = sadd.s32 1, %s24
      %s34 = scalar_select %p31, %s33, %s24
      %p35 = scmp.ge.s32.totalorder %s34, 2
      %s36 = scalar_select %p35, 0, %s34
      %s37 = ssub.s32 %s24, %s36
      %s38 = ssub.s32 %s25, %s32
      %s39 = sor.u32 %s37, %s38
      %p40 = scmp.eq.s32.totalorder %s39, 0
      %s42 = sadd.s32 %s41, 1
      %s43 = scalar_select %p40, %s41, %s42
      %p46 = pneg %p40
      %p47 = scmp.eq.s32.totalorder %s17, 1
      %p48 = por %p46, %p47
      %p49 = scmp.ne.s32.totalorder %s41, %s44
      %p50 = scmp.eq.s32.totalorder %s17, 0
      %p51 = por %p49, %p50
      %p52 = scmp.ne.s32.totalorder %s41, %s44
      %p53 = scmp.eq.s32.totalorder %s22, 1
      %p54 = por %p52, %p53
      %p55 = scmp.ne.s32.totalorder %s44, %s45
      %p56 = scmp.eq.s32.totalorder %s22, 0
      %p57 = por %p55, %p56
      %p58 = scmp.ne.s32.totalorder %s44, %s45
      %p59 = scmp.eq.s32.totalorder %s23, 1
      %p60 = por %p58, %p59
      %p62 = scmp.ne.s32.totalorder %s45, %s61
      %p63 = scmp.eq.s32.totalorder %s23, 0
      %p64 = por %p62, %p63
      %s65 = ssub.s32 %s25, %s32
      %p66 = scmp.eq.s32.totalorder %s65, 0
      %s68 = sadd.s32 %s67, 1
      %s69 = scalar_select %p66, %s67, %s68
      %p72 = pneg %p66
      %p73 = scmp.eq.s32.totalorder %s17, 1
      %p74 = por %p72, %p73
      %p75 = scmp.ne.s32.totalorder %s67, %s70
      %p76 = scmp.eq.s32.totalorder %s17, 0
      %p77 = por %p75, %p76
      %p78 = scmp.ne.s32.totalorder %s67, %s70
      %p79 = scmp.eq.s32.totalorder %s22, 1
      %p80 = por %p78, %p79
      %p81 = scmp.ne.s32.totalorder %s70, %s71
      %p82 = scmp.eq.s32.totalorder %s22, 0
      %p83 = por %p81, %p82
      %p84 = scmp.ne.s32.totalorder %s70, %s71
      %p85 = scmp.eq.s32.totalorder %s23, 1
      %p86 = por %p84, %p85
      %p88 = scmp.ne.s32.totalorder %s71, %s87
      %p89 = scmp.eq.s32.totalorder %s23, 0
      %p90 = por %p88, %p89
      %s92 = sadd.s32 %s91, 1
      %p95 = scmp.eq.s32.totalorder %s17, 1
      %p96 = scmp.ne.s32.totalorder %s91, %s93
      %p97 = scmp.eq.s32.totalorder %s17, 0
      %p98 = por %p96, %p97
      %p99 = scmp.ne.s32.totalorder %s91, %s93
      %p100 = scmp.eq.s32.totalorder %s22, 1
      %p101 = por %p99, %p100
      %p102 = scmp.ne.s32.totalorder %s93, %s94
      %p103 = scmp.eq.s32.totalorder %s22, 0
      %p104 = por %p102, %p103
      %p105 = scmp.ne.s32.totalorder %s93, %s94
      %p106 = scmp.eq.s32.totalorder %s23, 1
      %p107 = por %p105, %p106
      %p109 = scmp.ne.s32.totalorder %s94, %s108
      %p110 = scmp.eq.s32.totalorder %s23, 0
      %p111 = por %p109, %p110
      %s113 = sadd.s32 %s112, 1
      %p116 = scmp.eq.s32.totalorder %s17, 1
      %p117 = scmp.ne.s32.totalorder %s112, %s114
      %p118 = scmp.eq.s32.totalorder %s17, 0
      %p119 = por %p117, %p118
      %p120 = scmp.ne.s32.totalorder %s112, %s114
      %p121 = scmp.eq.s32.totalorder %s22, 1
      %p122 = por %p120, %p121
      %p123 = scmp.ne.s32.totalorder %s114, %s115
      %p124 = scmp.eq.s32.totalorder %s22, 0
      %p125 = por %p123, %p124
      %p126 = scmp.ne.s32.totalorder %s114, %s115
      %p127 = scmp.eq.s32.totalorder %s23, 1
      %p128 = por %p126, %p127
      %p130 = scmp.ne.s32.totalorder %s115, %s129
      %p131 = scmp.eq.s32.totalorder %s23, 0
      %p132 = por %p130, %p131
      %s133 = ssub.s32 %s24, %s36
      %s134 = ssub.s32 %s25, %s32
      %s135 = sor.u32 %s133, %s134
      %p136 = scmp.eq.s32.totalorder %s135, 0
      %s138 = sadd.s32 %s137, 1
      %s139 = scalar_select %p136, %s137, %s138
      %p142 = pneg %p136
      %p143 = scmp.eq.s32.totalorder %s17, 1
      %p144 = por %p142, %p143
      %p145 = scmp.ne.s32.totalorder %s137, %s140
      %p146 = scmp.eq.s32.totalorder %s17, 0
      %p147 = por %p145, %p146
      %p148 = scmp.ne.s32.totalorder %s137, %s140
      %p149 = scmp.eq.s32.totalorder %s22, 1
      %p150 = por %p148, %p149
      %p151 = scmp.ne.s32.totalorder %s140, %s141
      %p152 = scmp.eq.s32.totalorder %s22, 0
      %p153 = por %p151, %p152
      %p154 = scmp.ne.s32.totalorder %s140, %s141
      %p155 = scmp.eq.s32.totalorder %s23, 1
      %p156 = por %p154, %p155
      %p158 = scmp.ne.s32.totalorder %s141, %s157
      %p159 = scmp.eq.s32.totalorder %s23, 0
      %p160 = por %p158, %p159
      %p161 = scmp.le.s32.totalorder 1, %s17
      %p162 = scmp.lt.s32.totalorder %s17, 3
      %p163 = pnand %p161, %p162
      %p164 = pneg %p163
      // Predicated region
      $region9: #{tpu_custom_call.1} parent=5 // pred_check
        _
      $region10: #{tpu_custom_call.1} parent=5 // pred_check_branch
        %166 = sbr.rel (%p163) target = $region12
      $region11: #{tpu_custom_call.1} parent=5 // pred_region
        %s167 = ssub.s32 %s17, 1
        // Predicated region
        $region13: #{tpu_custom_call.1} parent=11 // pred_check
          %p168 = pneg %p83
        $region14: #{tpu_custom_call.1} parent=11 // pred_check_branch
          %170 = sbr.rel (%p168) target = $region16
        $region15: #{tpu_custom_call.1} parent=11 // pred_region
          %s171 = smul.u32 2, %s27
          %s173 = ssub.s32 32, 32
          %174 = vsyncadd [#allocation6], %s173
          %s175 = smul.addr %s171, 16
          %s176 = scalar_lea.hbm %s1, %s175
          %s178 = sshll.u32 [#allocation5], 4
          %s179 = int_to_ptr.vmem [resolvable:$true] %s178
          %181 = dma.hbm_to_vmem [thread:$0]  %s176, 32, %s179, [#allocation6]
        $region16: #{tpu_custom_call.1} parent=11 // pred_fallthru
          _
        // Predicated region
        $region17: #{tpu_custom_call.1} parent=11 // pred_check
          %p182 = pneg %p104
        $region18: #{tpu_custom_call.1} parent=11 // pred_check_branch
          %184 = sbr.rel (%p182) target = $region20
        $region19: #{tpu_custom_call.1} parent=11 // pred_region
          _
        $region20: #{tpu_custom_call.1} parent=11 // pred_fallthru
          _
        // Predicated region
        $region21: #{tpu_custom_call.1} parent=11 // pred_check
          %p185 = pneg %p125
        $region22: #{tpu_custom_call.1} parent=11 // pred_check_branch
          %187 = sbr.rel (%p185) target = $region24
        $region23: #{tpu_custom_call.1} parent=11 // pred_region
          _
        $region24: #{tpu_custom_call.1} parent=11 // pred_fallthru
          _
      $region12: #{tpu_custom_call.1} parent=5 // pred_fallthru
        _
      %p188 = scmp.lt.s32.totalorder %s17, 2
      // Predicated region
      $region25: #{tpu_custom_call.1} parent=5 // pred_check
        %p189 = pneg %p188
      $region26: #{tpu_custom_call.1} parent=5 // pred_check_branch
        %191 = sbr.rel (%p189) target = $region28
      $region27: #{tpu_custom_call.1} parent=5 // pred_region
        // Predicated region
        $region29: #{tpu_custom_call.1} parent=27 // pred_check
          %p192 = pneg %p51
        $region30: #{tpu_custom_call.1} parent=27 // pred_check_branch
          %194 = sbr.rel (%p192) target = $region32
        $region31: #{tpu_custom_call.1} parent=27 // pred_region
          %s195 = sand.u32 %s41, 1
          %s196 = scalar_lea.sflag [#allocation3], %s195
          %s197 = sand.u32 %s41, 1
          %s198 = smul.addr %s197, 8
          %s199 = scalar_lea.vmem [#allocation2], %s198
          %s200 = smul.u32 2, %s25
          %s202 = ssub.s32 128, 128
          %203 = vsyncadd %s196, %s202
          %s204 = smul.addr %s24, 2
          %s205 = sadd.s32 %s200, %s204
          %s206 = smul.addr %s205, 64
          %s207 = scalar_lea.hbm %s0, %s206
          %s209 = sshll.u32 %s199, 4
          %s210 = int_to_ptr.vmem [resolvable:$true] %s209
          %212 = dma.hbm_to_vmem [thread:$0]  %s207, 128, %s210, %s196
        $region32: #{tpu_custom_call.1} parent=27 // pred_fallthru
          _
      $region28: #{tpu_custom_call.1} parent=5 // pred_fallthru
        _
      %p213 = scmp.le.s32.totalorder 1, %s17
      %p214 = scmp.lt.s32.totalorder %s17, 3
      %p215 = pnand %p213, %p214
      %p216 = pneg %p215
      // Predicated region
      $region33: #{tpu_custom_call.1} parent=5 // pred_check
        _
      $region34: #{tpu_custom_call.1} parent=5 // pred_check_branch
        %218 = sbr.rel (%p215) target = $region36
      $region35: #{tpu_custom_call.1} parent=5 // pred_region
        %s219 = ssub.s32 %s17, 1
        %s220 = sand.u32 %s44, 1
        %s221 = scalar_lea.sflag [#allocation3], %s220
        %s222 = sand.u32 %s44, 1
        %s223 = smul.addr %s222, 8
        %s224 = scalar_lea.vmem [#allocation2], %s223
        // Predicated region
        $region37: #{tpu_custom_call.1} parent=35 // pred_check
          %p225 = pneg %p57
        $region38: #{tpu_custom_call.1} parent=35 // pred_check_branch
          %227 = sbr.rel (%p225) target = $region40
        $region39: #{tpu_custom_call.1} parent=35 // pred_region
          %228 = dma.done %s221, 128
        $region40: #{tpu_custom_call.1} parent=35 // pred_fallthru
          _
        // Predicated region
        $region41: #{tpu_custom_call.1} parent=35 // pred_check
          %p229 = pneg %p83
        $region42: #{tpu_custom_call.1} parent=35 // pred_check_branch
          %231 = sbr.rel (%p229) target = $region44
        $region43: #{tpu_custom_call.1} parent=35 // pred_region
          %232 = dma.done [#allocation6], 32
        $region44: #{tpu_custom_call.1} parent=35 // pred_fallthru
          _
        %s233 = sand.u32 %s44, 1
        %s234 = scalar_lea.sflag [#allocation3], %s233
        %s235 = sand.u32 %s44, 1
        %s236 = smul.addr %s235, 8
        %s237 = scalar_lea.vmem [#allocation2], %s236
        %p238 = pneg %p57
        %p239 = pneg %p54
        %p240 = pneg %p83
        %p241 = pneg %p80
        %p242 = pneg %p104
        %p243 = pneg %p101
        %p244 = pneg %p125
        %p245 = pneg %p122
        %p246 = pneg %p153
        %p247 = pneg %p150
        %s248 = sand.u32 %s140, 1
        %s249 = scalar_lea.sflag [#allocation4], %s248
        %s250 = sand.u32 %s140, 1
        %s251 = smul.addr %s250, 8
        %s252 = scalar_lea.vmem [#allocation7], %s251
        %s253 = smul.u32 2, %s27
        %s254 = smul.u32 2, %s27
        %s255 = smul.u32 2, %s27
        %v256 = vld [vmem:[#allocation5] sm:$0x3]
        %v257 = vld [vmem:[%s224] sm:$0xff]
        %v259 = vcombine.high %v257, %v257
        %261 = vrot.lane.b32.xlu0 %v257, 1
        %v262 = vpop.permute.xlu0 %261
        %263 = vrot.lane.b32.xlu0 %v259, 1
        %v264 = vpop.permute.xlu0 %263
        %v265 = vlaneseq
        %v266 = vand.u32 %v265, 127
        %vm267 = vcmp.lt.s32.totalorder %v266, 1
        %v268 = vsel %vm267, %v262, %v264
        %v269 = vsel %vm267, %v264, %v262
        %vm270 = vcmp.lt.s32.totalorder %v256, 1
        %v271 = vsel %vm270, 1, 0
        %v272 = vlaneseq
        %v273 = vshrl.u32 %v272, 7
        %v274 = vsub.s32 0, %v273
        %v275 = vrot.slane %v271, %v274
        %v276 = vlaneseq
        %v277 = vshrl.u32 %v276, 7
        %v278 = vsub.s32 1, %v277
        %v279 = vrot.slane %v271, %v278
        %vm280 = vcmp.eq.s32.totalorder %v275, 1
        %vm281 = vcmp.eq.s32.totalorder %v279, 1
        %v282 = vsel %vm280, 0.0, %v269
        %v283 = vsel %vm281, 0.0, %v268
        %v284 = vld [vmem:[%s2] sm:$0xf]
        %s285 = scalar_lea.vmem %s2, 4
        %v286 = vld [vmem:[%s285] sm:$0xf]
        %vm287 = vcmask 31744
        %v289 = vsel %vm287, %v286, 0
        %vm291 = vcmask 1043456
        %v292 = vsel %vm291, %v257, 0
        %v294 = vsel %vm291, %v259, 0
        %296 = vmatprep.subr.mxu0 %v294
        %297 = vmatpush1.msra.mxu0 %v292
        %298 = vmatprep.subr.mxu0 0.0
        %299 = vmatpush1.msra.mxu0 0.0
        %300 = vmatprep.subr.mxu0 0.0
        %301 = vmatpush1.msra.mxu0 0.0
        %302 = vmatprep.subr.mxu0 0.0
        %303 = vmatpush1.msra.mxu0 0.0
        %304 = vmatprep.subr.mxu0 0.0
        %305 = vmatpush1.msra.mxu0 0.0
        %306 = vmatprep.subr.mxu0 0.0
        %307 = vmatpush1.msra.mxu0 0.0
        %308 = vmatprep.subr.mxu0 0.0
        %309 = vmatpush1.msra.mxu0 0.0
        %310 = vmatprep.subr.mxu0 0.0
        %311 = vmatpush1.msra.mxu0 0.0
        %312 = vmatprep.subr.mxu0 0.0
        %313 = vmatpush1.msra.mxu0 0.0
        %314 = vmatprep.subr.mxu0 0.0
        %315 = vmatpush1.msra.mxu0 0.0
        %316 = vmatprep.subr.mxu0 0.0
        %317 = vmatpush1.msra.mxu0 0.0
        %318 = vmatprep.subr.mxu0 0.0
        %319 = vmatpush1.msra.mxu0 0.0
        %320 = vmatprep.subr.mxu0 0.0
        %321 = vmatpush1.msra.mxu0 0.0
        %322 = vmatprep.subr.mxu0 0.0
        %323 = vmatpush1.msra.mxu0 0.0
        %324 = vmatprep.subr.mxu0 0.0
        %325 = vmatpush1.msra.mxu0 0.0
        %326 = vmatprep.subr.mxu0 0.0
        %327 = vmatpush1.msra.mxu0 0.0
        %328 = vmatprep.subr.mxu0 0.0
        %329 = vmatpush1.msra.mxu0 0.0
        %330 = vmatprep.subr.mxu0 0.0
        %331 = vmatpush1.msra.mxu0 0.0
        %332 = vmatprep.subr.mxu0 0.0
        %333 = vmatpush1.msra.mxu0 0.0
        %334 = vmatprep.subr.mxu0 0.0
        %335 = vmatpush1.msra.mxu0 0.0
        %336 = vmatprep.subr.mxu0 0.0
        %337 = vmatpush1.msra.mxu0 0.0
        %338 = vmatprep.subr.mxu0 0.0
        %339 = vmatpush1.msra.mxu0 0.0
        %340 = vmatprep.subr.mxu0 0.0
        %341 = vmatpush1.msra.mxu0 0.0
        %342 = vmatprep.subr.mxu0 0.0
        %343 = vmatpush1.msra.mxu0 0.0
        %344 = vmatprep.subr.mxu0 0.0
        %345 = vmatpush1.msra.mxu0 0.0
        %346 = vmatprep.subr.mxu0 0.0
        %347 = vmatpush1.msra.mxu0 0.0
        %348 = vmatprep.subr.mxu0 0.0
        %349 = vmatpush1.msra.mxu0 0.0
        %350 = vmatprep.subr.mxu0 0.0
        %351 = vmatpush1.msra.mxu0 0.0
        %352 = vmatprep.subr.mxu0 0.0
        %353 = vmatpush1.msra.mxu0 0.0
        %354 = vmatprep.subr.mxu0 0.0
        %355 = vmatpush1.msra.mxu0 0.0
        %356 = vmatprep.subr.mxu0 0.0
        %357 = vmatpush1.msra.mxu0 0.0
        %358 = vmatprep.subr.mxu0 0.0
        %359 = vmatpush1.msra.mxu0 0.0
        %360 = vmatprep.mubr.f32.mxu0 0.0
        %361 = vmatmul.mubr.f32.gmra.mrb[0].mxu0 %v289
        %v362 = vpop.f32.mrb[0].mxu0
        %v363 = vadd.f32 0.0, %v362
        %v364 = vpop.f32.mrb[0].mxu0
        %v365 = vadd.f32 0.0, %v364
        %366 = vdwg.mxu0
        %v368 = vsel %vm287, %v284, 0
        %v371 = vsel %vm291, %v282, 0
        %v374 = vsel %vm291, %v283, 0
        %376 = vmatprep.subr.mxu0 %v374
        %377 = vmatpush1.msra.mxu0 %v371
        %378 = vmatprep.subr.mxu0 0.0
        %379 = vmatpush1.msra.mxu0 0.0
        %380 = vmatprep.subr.mxu0 0.0
        %381 = vmatpush1.msra.mxu0 0.0
        %382 = vmatprep.subr.mxu0 0.0
        %383 = vmatpush1.msra.mxu0 0.0
        %384 = vmatprep.subr.mxu0 0.0
        %385 = vmatpush1.msra.mxu0 0.0
        %386 = vmatprep.subr.mxu0 0.0
        %387 = vmatpush1.msra.mxu0 0.0
        %388 = vmatprep.subr.mxu0 0.0
        %389 = vmatpush1.msra.mxu0 0.0
        %390 = vmatprep.subr.mxu0 0.0
        %391 = vmatpush1.msra.mxu0 0.0
        %392 = vmatprep.subr.mxu0 0.0
        %393 = vmatpush1.msra.mxu0 0.0
        %394 = vmatprep.subr.mxu0 0.0
        %395 = vmatpush1.msra.mxu0 0.0
        %396 = vmatprep.subr.mxu0 0.0
        %397 = vmatpush1.msra.mxu0 0.0
        %398 = vmatprep.subr.mxu0 0.0
        %399 = vmatpush1.msra.mxu0 0.0
        %400 = vmatprep.subr.mxu0 0.0
        %401 = vmatpush1.msra.mxu0 0.0
        %402 = vmatprep.subr.mxu0 0.0
        %403 = vmatpush1.msra.mxu0 0.0
        %404 = vmatprep.subr.mxu0 0.0
        %405 = vmatpush1.msra.mxu0 0.0
        %406 = vmatprep.subr.mxu0 0.0
        %407 = vmatpush1.msra.mxu0 0.0
        %408 = vmatprep.subr.mxu0 0.0
        %409 = vmatpush1.msra.mxu0 0.0
        %410 = vmatprep.subr.mxu0 0.0
        %411 = vmatpush1.msra.mxu0 0.0
        %412 = vmatprep.subr.mxu0 0.0
        %413 = vmatpush1.msra.mxu0 0.0
        %414 = vmatprep.subr.mxu0 0.0
        %415 = vmatpush1.msra.mxu0 0.0
        %416 = vmatprep.subr.mxu0 0.0
        %417 = vmatpush1.msra.mxu0 0.0
        %418 = vmatprep.subr.mxu0 0.0
        %419 = vmatpush1.msra.mxu0 0.0
        %420 = vmatprep.subr.mxu0 0.0
        %421 = vmatpush1.msra.mxu0 0.0
        %422 = vmatprep.subr.mxu0 0.0
        %423 = vmatpush1.msra.mxu0 0.0
        %424 = vmatprep.subr.mxu0 0.0
        %425 = vmatpush1.msra.mxu0 0.0
        %426 = vmatprep.subr.mxu0 0.0
        %427 = vmatpush1.msra.mxu0 0.0
        %428 = vmatprep.subr.mxu0 0.0
        %429 = vmatpush1.msra.mxu0 0.0
        %430 = vmatprep.subr.mxu0 0.0
        %431 = vmatpush1.msra.mxu0 0.0
        %432 = vmatprep.subr.mxu0 0.0
        %433 = vmatpush1.msra.mxu0 0.0
        %434 = vmatprep.subr.mxu0 0.0
        %435 = vmatpush1.msra.mxu0 0.0
        %436 = vmatprep.subr.mxu0 0.0
        %437 = vmatpush1.msra.mxu0 0.0
        %438 = vmatprep.subr.mxu0 0.0
        %439 = vmatpush1.msra.mxu0 0.0
        %440 = vmatprep.mubr.f32.mxu0 0.0
        %441 = vmatmul.mubr.f32.gmra.mrb[0].mxu0 %v368
        %v442 = vpop.f32.mrb[0].mxu0
        %v443 = vadd.f32 %v363, %v442
        %v444 = vpop.f32.mrb[0].mxu0
        %v445 = vadd.f32 %v365, %v444
        %446 = vdwg.mxu0
        %v447 = vld [vmem:[%s3] sm:$0xf]
        %449 = vset.pattern.permute.xlu0 0
        %450 = vperm.xlu0 %449, %v447
        %v451 = vpop.permute.xlu0 %450
        %v453 = vadd.f32 %v443, %v451
        %v454 = vadd.f32 %v445, %v451
        %v455 = vmax.f32 %v453, 0.0
        %v456 = vmax.f32 %v454, 0.0
        %457 = vrot.lane.b32.xlu0 %v455, 2
        %v458 = vpop.permute.xlu0 %457
        %459 = vrot.lane.b32.xlu0 %v456, 2
        %v460 = vpop.permute.xlu0 %459
        %vm461 = vcmp.lt.s32.totalorder %v266, 2
        %v462 = vsel %vm461, %v458, %v460
        %v463 = vsel %vm461, %v460, %v458
        %vm464 = vcmp.lt.s32.totalorder %v256, 2
        %v465 = vsel %vm464, 1, 0
        %v466 = vlaneseq
        %v467 = vshrl.u32 %v466, 7
        %v468 = vsub.s32 0, %v467
        %v469 = vrot.slane %v465, %v468
        %v470 = vlaneseq
        %v471 = vshrl.u32 %v470, 7
        %v472 = vsub.s32 1, %v471
        %v473 = vrot.slane %v465, %v472
        %vm474 = vcmp.eq.s32.totalorder %v469, 1
        %vm475 = vcmp.eq.s32.totalorder %v473, 1
        %v476 = vsel %vm474, 0.0, %v463
        %v477 = vsel %vm475, 0.0, %v462
        %s478 = scalar_lea.vmem %s2, 8
        %v479 = vld [vmem:[%s478] sm:$0xf]
        %s480 = scalar_lea.vmem %s2, 12
        %v481 = vld [vmem:[%s480] sm:$0xf]
        %v483 = vsel %vm287, %v481, 0
        %v486 = vsel %vm291, %v455, 0
        %v489 = vsel %vm291, %v456, 0
        %491 = vmatprep.subr.mxu0 %v489
        %492 = vmatpush1.msra.mxu0 %v486
        %493 = vmatprep.subr.mxu0 0.0
        %494 = vmatpush1.msra.mxu0 0.0
        %495 = vmatprep.subr.mxu0 0.0
        %496 = vmatpush1.msra.mxu0 0.0
        %497 = vmatprep.subr.mxu0 0.0
        %498 = vmatpush1.msra.mxu0 0.0
        %499 = vmatprep.subr.mxu0 0.0
        %500 = vmatpush1.msra.mxu0 0.0
        %501 = vmatprep.subr.mxu0 0.0
        %502 = vmatpush1.msra.mxu0 0.0
        %503 = vmatprep.subr.mxu0 0.0
        %504 = vmatpush1.msra.mxu0 0.0
        %505 = vmatprep.subr.mxu0 0.0
        %506 = vmatpush1.msra.mxu0 0.0
        %507 = vmatprep.subr.mxu0 0.0
        %508 = vmatpush1.msra.mxu0 0.0
        %509 = vmatprep.subr.mxu0 0.0
        %510 = vmatpush1.msra.mxu0 0.0
        %511 = vmatprep.subr.mxu0 0.0
        %512 = vmatpush1.msra.mxu0 0.0
        %513 = vmatprep.subr.mxu0 0.0
        %514 = vmatpush1.msra.mxu0 0.0
        %515 = vmatprep.subr.mxu0 0.0
        %516 = vmatpush1.msra.mxu0 0.0
        %517 = vmatprep.subr.mxu0 0.0
        %518 = vmatpush1.msra.mxu0 0.0
        %519 = vmatprep.subr.mxu0 0.0
        %520 = vmatpush1.msra.mxu0 0.0
        %521 = vmatprep.subr.mxu0 0.0
        %522 = vmatpush1.msra.mxu0 0.0
        %523 = vmatprep.subr.mxu0 0.0
        %524 = vmatpush1.msra.mxu0 0.0
        %525 = vmatprep.subr.mxu0 0.0
        %526 = vmatpush1.msra.mxu0 0.0
        %527 = vmatprep.subr.mxu0 0.0
        %528 = vmatpush1.msra.mxu0 0.0
        %529 = vmatprep.subr.mxu0 0.0
        %530 = vmatpush1.msra.mxu0 0.0
        %531 = vmatprep.subr.mxu0 0.0
        %532 = vmatpush1.msra.mxu0 0.0
        %533 = vmatprep.subr.mxu0 0.0
        %534 = vmatpush1.msra.mxu0 0.0
        %535 = vmatprep.subr.mxu0 0.0
        %536 = vmatpush1.msra.mxu0 0.0
        %537 = vmatprep.subr.mxu0 0.0
        %538 = vmatpush1.msra.mxu0 0.0
        %539 = vmatprep.subr.mxu0 0.0
        %540 = vmatpush1.msra.mxu0 0.0
        %541 = vmatprep.subr.mxu0 0.0
        %542 = vmatpush1.msra.mxu0 0.0
        %543 = vmatprep.subr.mxu0 0.0
        %544 = vmatpush1.msra.mxu0 0.0
        %545 = vmatprep.subr.mxu0 0.0
        %546 = vmatpush1.msra.mxu0 0.0
        %547 = vmatprep.subr.mxu0 0.0
        %548 = vmatpush1.msra.mxu0 0.0
        %549 = vmatprep.subr.mxu0 0.0
        %550 = vmatpush1.msra.mxu0 0.0
        %551 = vmatprep.subr.mxu0 0.0
        %552 = vmatpush1.msra.mxu0 0.0
        %553 = vmatprep.subr.mxu0 0.0
        %554 = vmatpush1.msra.mxu0 0.0
        %555 = vmatprep.mubr.f32.mxu0 0.0
        %556 = vmatmul.mubr.f32.gmra.mrb[0].mxu0 %v483
        %v557 = vpop.f32.mrb[0].mxu0
        %v558 = vadd.f32 0.0, %v557
        %v559 = vpop.f32.mrb[0].mxu0
        %v560 = vadd.f32 0.0, %v559
        %561 = vdwg.mxu0
        %v563 = vsel %vm287, %v479, 0
        %v566 = vsel %vm291, %v476, 0
        %v569 = vsel %vm291, %v477, 0
        %571 = vmatprep.subr.mxu0 %v569
        %572 = vmatpush1.msra.mxu0 %v566
        %573 = vmatprep.subr.mxu0 0.0
        %574 = vmatpush1.msra.mxu0 0.0
        %575 = vmatprep.subr.mxu0 0.0
        %576 = vmatpush1.msra.mxu0 0.0
        %577 = vmatprep.subr.mxu0 0.0
        %578 = vmatpush1.msra.mxu0 0.0
        %579 = vmatprep.subr.mxu0 0.0
        %580 = vmatpush1.msra.mxu0 0.0
        %581 = vmatprep.subr.mxu0 0.0
        %582 = vmatpush1.msra.mxu0 0.0
        %583 = vmatprep.subr.mxu0 0.0
        %584 = vmatpush1.msra.mxu0 0.0
        %585 = vmatprep.subr.mxu0 0.0
        %586 = vmatpush1.msra.mxu0 0.0
        %587 = vmatprep.subr.mxu0 0.0
        %588 = vmatpush1.msra.mxu0 0.0
        %589 = vmatprep.subr.mxu0 0.0
        %590 = vmatpush1.msra.mxu0 0.0
        %591 = vmatprep.subr.mxu0 0.0
        %592 = vmatpush1.msra.mxu0 0.0
        %593 = vmatprep.subr.mxu0 0.0
        %594 = vmatpush1.msra.mxu0 0.0
        %595 = vmatprep.subr.mxu0 0.0
        %596 = vmatpush1.msra.mxu0 0.0
        %597 = vmatprep.subr.mxu0 0.0
        %598 = vmatpush1.msra.mxu0 0.0
        %599 = vmatprep.subr.mxu0 0.0
        %600 = vmatpush1.msra.mxu0 0.0
        %601 = vmatprep.subr.mxu0 0.0
        %602 = vmatpush1.msra.mxu0 0.0
        %603 = vmatprep.subr.mxu0 0.0
        %604 = vmatpush1.msra.mxu0 0.0
        %605 = vmatprep.subr.mxu0 0.0
        %606 = vmatpush1.msra.mxu0 0.0
        %607 = vmatprep.subr.mxu0 0.0
        %608 = vmatpush1.msra.mxu0 0.0
        %609 = vmatprep.subr.mxu0 0.0
        %610 = vmatpush1.msra.mxu0 0.0
        %611 = vmatprep.subr.mxu0 0.0
        %612 = vmatpush1.msra.mxu0 0.0
        %613 = vmatprep.subr.mxu0 0.0
        %614 = vmatpush1.msra.mxu0 0.0
        %615 = vmatprep.subr.mxu0 0.0
        %616 = vmatpush1.msra.mxu0 0.0
        %617 = vmatprep.subr.mxu0 0.0
        %618 = vmatpush1.msra.mxu0 0.0
        %619 = vmatprep.subr.mxu0 0.0
        %620 = vmatpush1.msra.mxu0 0.0
        %621 = vmatprep.subr.mxu0 0.0
        %622 = vmatpush1.msra.mxu0 0.0
        %623 = vmatprep.subr.mxu0 0.0
        %624 = vmatpush1.msra.mxu0 0.0
        %625 = vmatprep.subr.mxu0 0.0
        %626 = vmatpush1.msra.mxu0 0.0
        %627 = vmatprep.subr.mxu0 0.0
        %628 = vmatpush1.msra.mxu0 0.0
        %629 = vmatprep.subr.mxu0 0.0
        %630 = vmatpush1.msra.mxu0 0.0
        %631 = vmatprep.subr.mxu0 0.0
        %632 = vmatpush1.msra.mxu0 0.0
        %633 = vmatprep.subr.mxu0 0.0
        %634 = vmatpush1.msra.mxu0 0.0
        %635 = vmatprep.mubr.f32.mxu0 0.0
        %636 = vmatmul.mubr.f32.gmra.mrb[0].mxu0 %v563
        %v637 = vpop.f32.mrb[0].mxu0
        %v638 = vadd.f32 %v558, %v637
        %v639 = vpop.f32.mrb[0].mxu0
        %v640 = vadd.f32 %v560, %v639
        %641 = vdwg.mxu0
        %s642 = scalar_lea.vmem %s3, 4
        %v643 = vld [vmem:[%s642] sm:$0xf]
        %645 = vset.pattern.permute.xlu0 0
        %646 = vperm.xlu0 %645, %v643
        %v647 = vpop.permute.xlu0 %646
        %v649 = vadd.f32 %v638, %v647
        %v650 = vadd.f32 %v640, %v647
        %v651 = vmax.f32 %v649, 0.0
        %v652 = vmax.f32 %v650, 0.0
        %v655 = vcombine.low %v651, %v652
        %657 = vst [vmem:[%s252] sm:$0xff] %v655
        %s658 = sand.u32 %s140, 1
        %s659 = scalar_lea.sflag [#allocation4], %s658
        %s660 = sand.u32 %s140, 1
        %s661 = smul.addr %s660, 8
        %s662 = scalar_lea.vmem [#allocation7], %s661
        // Predicated region
        $region45: #{tpu_custom_call.1} parent=35 // pred_check
          %p663 = pneg %p150
        $region46: #{tpu_custom_call.1} parent=35 // pred_check_branch
          %665 = sbr.rel (%p663) target = $region48
        $region47: #{tpu_custom_call.1} parent=35 // pred_region
          %s666 = smul.u32 2, %s27
          %s668 = ssub.s32 128, 128
          %669 = vsyncadd %s659, %s668
          %s670 = smul.addr %s26, 2
          %s671 = sadd.s32 %s666, %s670
          %s672 = smul.addr %s671, 64
          %s673 = scalar_lea.hbm %s4, %s672
          %s675 = sshll.u32 %s662, 4
          %s676 = int_to_ptr.vmem [resolvable:$true] %s675
          %678 = dma.vmem_to_hbm [thread:$0]  %s676, 128, %s673, %s659
        $region48: #{tpu_custom_call.1} parent=35 // pred_fallthru
          _
      $region36: #{tpu_custom_call.1} parent=5 // pred_fallthru
        _
      %p679 = scmp.le.s32.totalorder 2, %s17
      // Predicated region
      $region49: #{tpu_custom_call.1} parent=5 // pred_check
        %p680 = pneg %p679
      $region50: #{tpu_custom_call.1} parent=5 // pred_check_branch
        %682 = sbr.rel (%p680) target = $region52
      $region51: #{tpu_custom_call.1} parent=5 // pred_region
        %s683 = ssub.s32 %s17, 2
        // Predicated region
        $region53: #{tpu_custom_call.1} parent=51 // pred_check
          %p684 = pneg %p156
        $region54: #{tpu_custom_call.1} parent=51 // pred_check_branch
          %686 = sbr.rel (%p684) target = $region56
        $region55: #{tpu_custom_call.1} parent=51 // pred_region
          %s687 = sand.u32 %s141, 1
          %s688 = scalar_lea.sflag [#allocation4], %s687
          %s689 = sand.u32 %s141, 1
          %s690 = smul.addr %s689, 8
          %s691 = scalar_lea.vmem [#allocation7], %s690
          %692 = dma.done %s688, 128
        $region56: #{tpu_custom_call.1} parent=51 // pred_fallthru
          _
      $region52: #{tpu_custom_call.1} parent=5 // pred_fallthru
        _
    $region6: #{tpu_custom_call.1} parent=1 // loop_footer
      %s21 = sadd.s32 1, %s17
    $region7: #{tpu_custom_call.1} parent=1 // loop_footer_branch
      %16 = sbr.rel target = $region3
    $region8: #{tpu_custom_call.1} parent=1 // loop_exit
      _
    %693 = vsyncpa [#allocation3], 1
    %s694 = scalar_lea.sflag [#allocation3], 1
    %695 = vsyncpa %s694, 1
    %696 = vsyncpa [#allocation6], 1
    %697 = vsyncpa [#allocation4], 1
    %s698 = scalar_lea.sflag [#allocation4], 1
    %699 = vsyncpa %s698, 1

</llo_original>
